<compile_context>
chip_gen: v5e
topology: v5e:2x2
jax: 0.10.0
libtpu: 0.0.40
codegen_flags: <defaults>
</compile_context>

<pallas_src>
import functools

import jax
import jax.numpy as jnp
from jax.experimental import pallas as pl
from jax.experimental.pallas import tpu as pltpu

_LANES = 128


def _dice_bce_partials_kernel(x_ref, t_ref, out_ref, *, n_valid):
    i = pl.program_id(0)
    br, lanes = x_ref.shape

    def partials(mask_tail):
        x = x_ref[...].astype(jnp.float32)          # (BR, 128)
        t = t_ref[...].astype(jnp.float32)          # (BR, 128)

        # Shared transcendental work: one exp + one log1p per element.
        e = jnp.exp(-jnp.abs(x))
        s = pl.reciprocal(1.0 + e, approx=True)     # EUP, near-free slot
        p = jnp.where(x >= 0, s, 1.0 - s)           # == sigmoid(x)
        # Numerically stable BCE-with-logits == BCE(sigmoid(x), t).
        bce = jnp.maximum(x, 0.0) - x * t + jnp.log1p(e)
        pt = p * t

        if mask_tail:
            # Last (possibly partial) tile only: zero out flat indices past
            # n_valid.  This covers both the <128-element lane pad and any
            # rows the pipeline fetched past the end of the array
            # (unspecified data), so ALL four partials are masked.
            row_ids = jax.lax.broadcasted_iota(jnp.int32, (br, lanes), 0)
            lane_ids = jax.lax.broadcasted_iota(jnp.int32, (br, lanes), 1)
            flat_idx = (i * br + row_ids) * lanes + lane_ids
            valid = flat_idx < n_valid
            zero = jnp.float32(0.0)
            pt = jnp.where(valid, pt, zero)
            p = jnp.where(valid, p, zero)
            t = jnp.where(valid, t, zero)
            bce = jnp.where(valid, bce, zero)

        # Sublane-only reduce -> lane-wise partial sums; direct row stores
        # (no concatenate / reshape epilogue).
        out_ref[0, 0, :] = jnp.sum(pt, axis=0)
        out_ref[0, 1, :] = jnp.sum(p, axis=0)
        out_ref[0, 2, :] = jnp.sum(t, axis=0)
        out_ref[0, 3, :] = jnp.sum(bce, axis=0)

    tile_full = (i + 1) * (br * lanes) <= n_valid

    @pl.when(tile_full)
    def _():
        partials(False)                              # unmasked fast path

    @pl.when(jnp.logical_not(tile_full))
    def _():
        partials(True)                               # masked tail path


def _pick_block_rows(rows):
    # ~2 MiB f32 per input block (2 inputs x 2 pipeline buffers ~= 8 MiB of
    # streaming VMEM, plus in-kernel temporaries well under the explicit
    # vmem_limit_bytes below), while keeping >= 4 grid steps on larger
    # inputs so the parallel grid axis can use both v7x TensorCores.
    br = max(16, min(4096, pl.cdiv(rows, 4)))
    return ((br + 15) // 16) * 16                    # sublane-friendly


def dice_bce_loss(inputs, targets, smooth=1.0, *, block_rows=None):
    """DiceBCELoss.forward: BCE(sigmoid(inputs), targets) + soft-Dice loss."""
    n = inputs.size
    x = inputs.reshape(-1)
    t = targets.reshape(-1)

    rows = pl.cdiv(n, _LANES)
    if rows * _LANES != n:
        # Ragged tail only: pad < 128 elements up to a lane multiple.  The
        # common lane-aligned B*C*H*W case takes the no-copy reshape path.
        pad = rows * _LANES - n
        x = jnp.pad(x, (0, pad))
        t = jnp.pad(t, (0, pad))
    x = x.reshape(rows, _LANES)
    t = t.reshape(rows, _LANES)

    if block_rows is None:
        block_rows = _pick_block_rows(rows)
    grid = pl.cdiv(rows, block_rows)

    kernel = functools.partial(_dice_bce_partials_kernel, n_valid=n)

    bytes_accessed = (x.size * x.dtype.itemsize + t.size * t.dtype.itemsize
                      + grid * 4 * _LANES * 4)
    cost = pl.CostEstimate(flops=20 * n, transcendentals=2 * n,
                           bytes_accessed=bytes_accessed)

    partials = pl.pallas_call(
        kernel,
        out_shape=jax.ShapeDtypeStruct((grid, 4, _LANES), jnp.float32),
        grid_spec=pltpu.PrefetchScalarGridSpec(
            num_scalar_prefetch=0,
            grid=(grid,),
            in_specs=[
                pl.BlockSpec((block_rows, _LANES), lambda i: (i, 0)),
                pl.BlockSpec((block_rows, _LANES), lambda i: (i, 0)),
            ],
            out_specs=pl.BlockSpec((1, 4, _LANES), lambda i: (i, 0, 0)),
        ),
        compiler_params=pltpu.CompilerParams(
            dimension_semantics=("parallel",),
            vmem_limit_bytes=48 * 1024 * 1024,
        ),
        cost_estimate=cost,
    )(x, t)

    sums = jnp.sum(partials, axis=(0, 2))            # (4,) tiny reduce in XLA
    intersection, sum_p, sum_t, bce_sum = sums[0], sums[1], sums[2], sums[3]
    bce = bce_sum / n
    dice = 1.0 - (2.0 * intersection + smooth) / (sum_p + sum_t + smooth)
    return bce + dice


def _reference_dice_bce(inputs, targets, smooth=1.0):
    # Pure-JAX mirror of the PyTorch forward (sigmoid -> BCE mean + dice).
    p = jax.nn.sigmoid(inputs.astype(jnp.float32)).reshape(-1)
    t = targets.astype(jnp.float32).reshape(-1)
    intersection = jnp.sum(p * t)
    dice = 1.0 - (2.0 * intersection + smooth) / (jnp.sum(p) + jnp.sum(t) + smooth)
    bce = jnp.mean(-(t * jnp.log(p) + (1.0 - t) * jnp.log(1.0 - p)))
    return bce + dice


if __name__ == "__main__":
    key = jax.random.PRNGKey(0)
    k1, k2, k3, k4 = jax.random.split(key, 4)

    # Segmentation-style logits / binary targets: (batch=2, channels=4, 16, 16)
    # 2048 elements -> lane-aligned, no pad, fully-valid fast path.
    x = jax.random.normal(k1, (2, 4, 16, 16), dtype=jnp.float32)
    t = (jax.random.uniform(k2, (2, 4, 16, 16)) > 0.5).astype(jnp.float32)
    loss = dice_bce_loss(x, t)
    jax.block_until_ready(loss)
    ref = _reference_dice_bce(x, t)
    # approx reciprocal in-kernel -> slightly looser tolerance than f32-exact.
    assert jnp.allclose(loss, ref, rtol=2e-3, atol=2e-3), (loss, ref)

    # Ragged element count (300 elems) exercises the masked-tail path
    # (lane pad + partial last block rows).
    x2 = jax.random.normal(k3, (3, 10, 10), dtype=jnp.float32)
    t2 = (jax.random.uniform(k4, (3, 10, 10)) > 0.5).astype(jnp.float32)
    loss2 = dice_bce_loss(x2, t2)
    jax.block_until_ready(loss2)
    ref2 = _reference_dice_bce(x2, t2)
    assert jnp.allclose(loss2, ref2, rtol=2e-3, atol=2e-3), (loss2, ref2)

    print("KERNEL_OK")
</pallas_src>

<mosaic_0001>
module attributes {stable_mosaic.version = 11 : i64} {
  func.func @_dice_bce_partials_kernel(%arg0: i32, %arg1: memref<16x128xf32, #tpu.memory_space<vmem>>, %arg2: memref<16x128xf32, #tpu.memory_space<vmem>>, %arg3: memref<1x4x128xf32, #tpu.memory_space<vmem>>) attributes {dimension_semantics = [#tpu.dimension_semantics<parallel>], iteration_bounds = array<i64: 1>, scalar_prefetch = 0 : i64, scratch_operands = 0 : i64, tpu.core_type = #tpu.core_type<tc>, window_params = [{transform_indices = @transform_0, window_bounds = array<i64: 16, 128>}, {transform_indices = @transform_1, window_bounds = array<i64: 16, 128>}, {transform_indices = @transform_2, window_bounds = array<i64: 1, 4, 128>}]} {
    %c1_i32 = arith.constant 1 : i32
    %0 = arith.addi %arg0, %c1_i32 : i32
    %c2048_i32 = arith.constant 2048 : i32
    %1 = arith.muli %0, %c2048_i32 : i32
    %c2048_i32_0 = arith.constant 2048 : i32
    %2 = arith.cmpi sle, %1, %c2048_i32_0 : i32
    %3 = arith.extui %2 : i1 to i32
    %c0_i32 = arith.constant 0 : i32
    %4 = arith.cmpi ne, %3, %c0_i32 : i32
    scf.if %4 {
      %c0 = arith.constant 0 : index
      %c0_2 = arith.constant 0 : index
      %8 = vector.load %arg1[%c0, %c0_2] : memref<16x128xf32, #tpu.memory_space<vmem>>, vector<16x128xf32>
      %c0_3 = arith.constant 0 : index
      %c0_4 = arith.constant 0 : index
      %9 = vector.load %arg2[%c0_3, %c0_4] : memref<16x128xf32, #tpu.memory_space<vmem>>, vector<16x128xf32>
      %10 = math.absf %8 : vector<16x128xf32>
      %cst = arith.constant 0.000000e+00 : f32
      %11 = vector.broadcast %cst : f32 to vector<16x128xf32>
      %12 = arith.subf %11, %10 : vector<16x128xf32>
      %13 = math.exp %12 : vector<16x128xf32>
      %cst_5 = arith.constant 1.000000e+00 : f32
      %14 = vector.broadcast %cst_5 : f32 to vector<16x128xf32>
      %15 = arith.addf %14, %13 : vector<16x128xf32>
      %16 = tpu.reciprocal %15 {approx = true} : vector<16x128xf32> -> vector<16x128xf32>
      %cst_6 = arith.constant 0.000000e+00 : f32
      %17 = vector.broadcast %cst_6 : f32 to vector<16x128xf32>
      %18 = arith.cmpf oge, %8, %17 : vector<16x128xf32>
      %cst_7 = arith.constant 1.000000e+00 : f32
      %19 = vector.broadcast %cst_7 : f32 to vector<16x128xf32>
      %20 = arith.subf %19, %16 : vector<16x128xf32>
      %21 = arith.select %18, %16, %20 : vector<16x128xi1>, vector<16x128xf32>
      %cst_8 = arith.constant 0.000000e+00 : f32
      %22 = vector.broadcast %cst_8 : f32 to vector<16x128xf32>
      %23 = arith.maximumf %8, %22 : vector<16x128xf32>
      %24 = arith.mulf %8, %9 : vector<16x128xf32>
      %25 = arith.subf %23, %24 : vector<16x128xf32>
      %26 = math.log1p %13 : vector<16x128xf32>
      %27 = arith.addf %25, %26 : vector<16x128xf32>
      %28 = arith.mulf %21, %9 : vector<16x128xf32>
      %cst_9 = arith.constant dense<0.000000e+00> : vector<128xf32>
      %29 = vector.multi_reduction <add>, %28, %cst_9 [0] : vector<16x128xf32> to vector<128xf32>
      %c0_10 = arith.constant 0 : index
      %c0_11 = arith.constant 0 : index
      %c0_12 = arith.constant 0 : index
      %30 = vector.load %arg3[%c0_10, %c0_11, %c0_12] : memref<1x4x128xf32, #tpu.memory_space<vmem>>, vector<1x1x128xf32>
      %31 = vector.shape_cast %30 : vector<1x1x128xf32> to vector<128xf32>
      %32 = vector.shape_cast %29 : vector<128xf32> to vector<1x1x128xf32>
      tpu.vector_store %arg3[%c0_10, %c0_11, %c0_12], %32 {strides = array<i32>} : memref<1x4x128xf32, #tpu.memory_space<vmem>>, vector<1x1x128xf32>,
      %cst_13 = arith.constant dense<0.000000e+00> : vector<128xf32>
      %33 = vector.multi_reduction <add>, %21, %cst_13 [0] : vector<16x128xf32> to vector<128xf32>
      %c0_14 = arith.constant 0 : index
      %c1 = arith.constant 1 : index
      %c0_15 = arith.constant 0 : index
      %34 = vector.load %arg3[%c0_14, %c1, %c0_15] : memref<1x4x128xf32, #tpu.memory_space<vmem>>, vector<1x1x128xf32>
      %35 = vector.shape_cast %34 : vector<1x1x128xf32> to vector<128xf32>
      %36 = vector.shape_cast %33 : vector<128xf32> to vector<1x1x128xf32>
      tpu.vector_store %arg3[%c0_14, %c1, %c0_15], %36 {strides = array<i32>} : memref<1x4x128xf32, #tpu.memory_space<vmem>>, vector<1x1x128xf32>,
      %cst_16 = arith.constant dense<0.000000e+00> : vector<128xf32>
      %37 = vector.multi_reduction <add>, %9, %cst_16 [0] : vector<16x128xf32> to vector<128xf32>
      %c0_17 = arith.constant 0 : index
      %c2 = arith.constant 2 : index
      %c0_18 = arith.constant 0 : index
      %38 = vector.load %arg3[%c0_17, %c2, %c0_18] : memref<1x4x128xf32, #tpu.memory_space<vmem>>, vector<1x1x128xf32>
      %39 = vector.shape_cast %38 : vector<1x1x128xf32> to vector<128xf32>
      %40 = vector.shape_cast %37 : vector<128xf32> to vector<1x1x128xf32>
      tpu.vector_store %arg3[%c0_17, %c2, %c0_18], %40 {strides = array<i32>} : memref<1x4x128xf32, #tpu.memory_space<vmem>>, vector<1x1x128xf32>,
      %cst_19 = arith.constant dense<0.000000e+00> : vector<128xf32>
      %41 = vector.multi_reduction <add>, %27, %cst_19 [0] : vector<16x128xf32> to vector<128xf32>
      %c0_20 = arith.constant 0 : index
      %c3 = arith.constant 3 : index
      %c0_21 = arith.constant 0 : index
      %42 = vector.load %arg3[%c0_20, %c3, %c0_21] : memref<1x4x128xf32, #tpu.memory_space<vmem>>, vector<1x1x128xf32>
      %43 = vector.shape_cast %42 : vector<1x1x128xf32> to vector<128xf32>
      %44 = vector.shape_cast %41 : vector<128xf32> to vector<1x1x128xf32>
      tpu.vector_store %arg3[%c0_20, %c3, %c0_21], %44 {strides = array<i32>} : memref<1x4x128xf32, #tpu.memory_space<vmem>>, vector<1x1x128xf32>,
    } else {
    }
    %true = arith.constant true
    %5 = arith.xori %2, %true : i1
    %6 = arith.extui %5 : i1 to i32
    %c0_i32_1 = arith.constant 0 : i32
    %7 = arith.cmpi ne, %6, %c0_i32_1 : i32
    scf.if %7 {
      %c0 = arith.constant 0 : index
      %c0_2 = arith.constant 0 : index
      %8 = vector.load %arg1[%c0, %c0_2] : memref<16x128xf32, #tpu.memory_space<vmem>>, vector<16x128xf32>
      %c0_3 = arith.constant 0 : index
      %c0_4 = arith.constant 0 : index
      %9 = vector.load %arg2[%c0_3, %c0_4] : memref<16x128xf32, #tpu.memory_space<vmem>>, vector<16x128xf32>
      %10 = math.absf %8 : vector<16x128xf32>
      %cst = arith.constant 0.000000e+00 : f32
      %11 = vector.broadcast %cst : f32 to vector<16x128xf32>
      %12 = arith.subf %11, %10 : vector<16x128xf32>
      %13 = math.exp %12 : vector<16x128xf32>
      %cst_5 = arith.constant 1.000000e+00 : f32
      %14 = vector.broadcast %cst_5 : f32 to vector<16x128xf32>
      %15 = arith.addf %14, %13 : vector<16x128xf32>
      %16 = tpu.reciprocal %15 {approx = true} : vector<16x128xf32> -> vector<16x128xf32>
      %cst_6 = arith.constant 0.000000e+00 : f32
      %17 = vector.broadcast %cst_6 : f32 to vector<16x128xf32>
      %18 = arith.cmpf oge, %8, %17 : vector<16x128xf32>
      %cst_7 = arith.constant 1.000000e+00 : f32
      %19 = vector.broadcast %cst_7 : f32 to vector<16x128xf32>
      %20 = arith.subf %19, %16 : vector<16x128xf32>
      %21 = arith.select %18, %16, %20 : vector<16x128xi1>, vector<16x128xf32>
      %cst_8 = arith.constant 0.000000e+00 : f32
      %22 = vector.broadcast %cst_8 : f32 to vector<16x128xf32>
      %23 = arith.maximumf %8, %22 : vector<16x128xf32>
      %24 = arith.mulf %8, %9 : vector<16x128xf32>
      %25 = arith.subf %23, %24 : vector<16x128xf32>
      %26 = math.log1p %13 : vector<16x128xf32>
      %27 = arith.addf %25, %26 : vector<16x128xf32>
      %28 = arith.mulf %21, %9 : vector<16x128xf32>
      %29 = tpu.iota {dimensions = array<i32: 0>} : vector<16x128xi32>
      %30 = tpu.iota {dimensions = array<i32: 1>} : vector<16x128xi32>
      %c16_i32 = arith.constant 16 : i32
      %31 = arith.muli %arg0, %c16_i32 : i32
      %32 = vector.broadcast %31 : i32 to vector<16x128xi32>
      %33 = arith.addi %32, %29 : vector<16x128xi32>
      %c128_i32 = arith.constant 128 : i32
      %34 = vector.broadcast %c128_i32 : i32 to vector<16x128xi32>
      %35 = arith.muli %33, %34 : vector<16x128xi32>
      %36 = arith.addi %35, %30 : vector<16x128xi32>
      %c2048_i32_9 = arith.constant 2048 : i32
      %37 = vector.broadcast %c2048_i32_9 : i32 to vector<16x128xi32>
      %38 = arith.cmpi slt, %36, %37 : vector<16x128xi32>
      %cst_10 = arith.constant 0.000000e+00 : f32
      %39 = vector.broadcast %cst_10 : f32 to vector<16x128xf32>
      %40 = arith.select %38, %28, %39 : vector<16x128xi1>, vector<16x128xf32>
      %cst_11 = arith.constant 0.000000e+00 : f32
      %41 = vector.broadcast %cst_11 : f32 to vector<16x128xf32>
      %42 = arith.select %38, %21, %41 : vector<16x128xi1>, vector<16x128xf32>
      %cst_12 = arith.constant 0.000000e+00 : f32
      %43 = vector.broadcast %cst_12 : f32 to vector<16x128xf32>
      %44 = arith.select %38, %9, %43 : vector<16x128xi1>, vector<16x128xf32>
      %cst_13 = arith.constant 0.000000e+00 : f32
      %45 = vector.broadcast %cst_13 : f32 to vector<16x128xf32>
      %46 = arith.select %38, %27, %45 : vector<16x128xi1>, vector<16x128xf32>
      %cst_14 = arith.constant dense<0.000000e+00> : vector<128xf32>
      %47 = vector.multi_reduction <add>, %40, %cst_14 [0] : vector<16x128xf32> to vector<128xf32>
      %c0_15 = arith.constant 0 : index
      %c0_16 = arith.constant 0 : index
      %c0_17 = arith.constant 0 : index
      %48 = vector.load %arg3[%c0_15, %c0_16, %c0_17] : memref<1x4x128xf32, #tpu.memory_space<vmem>>, vector<1x1x128xf32>
      %49 = vector.shape_cast %48 : vector<1x1x128xf32> to vector<128xf32>
      %50 = vector.shape_cast %47 : vector<128xf32> to vector<1x1x128xf32>
      tpu.vector_store %arg3[%c0_15, %c0_16, %c0_17], %50 {strides = array<i32>} : memref<1x4x128xf32, #tpu.memory_space<vmem>>, vector<1x1x128xf32>,
      %cst_18 = arith.constant dense<0.000000e+00> : vector<128xf32>
      %51 = vector.multi_reduction <add>, %42, %cst_18 [0] : vector<16x128xf32> to vector<128xf32>
      %c0_19 = arith.constant 0 : index
      %c1 = arith.constant 1 : index
      %c0_20 = arith.constant 0 : index
      %52 = vector.load %arg3[%c0_19, %c1, %c0_20] : memref<1x4x128xf32, #tpu.memory_space<vmem>>, vector<1x1x128xf32>
      %53 = vector.shape_cast %52 : vector<1x1x128xf32> to vector<128xf32>
      %54 = vector.shape_cast %51 : vector<128xf32> to vector<1x1x128xf32>
      tpu.vector_store %arg3[%c0_19, %c1, %c0_20], %54 {strides = array<i32>} : memref<1x4x128xf32, #tpu.memory_space<vmem>>, vector<1x1x128xf32>,
      %cst_21 = arith.constant dense<0.000000e+00> : vector<128xf32>
      %55 = vector.multi_reduction <add>, %44, %cst_21 [0] : vector<16x128xf32> to vector<128xf32>
      %c0_22 = arith.constant 0 : index
      %c2 = arith.constant 2 : index
      %c0_23 = arith.constant 0 : index
      %56 = vector.load %arg3[%c0_22, %c2, %c0_23] : memref<1x4x128xf32, #tpu.memory_space<vmem>>, vector<1x1x128xf32>
      %57 = vector.shape_cast %56 : vector<1x1x128xf32> to vector<128xf32>
      %58 = vector.shape_cast %55 : vector<128xf32> to vector<1x1x128xf32>
      tpu.vector_store %arg3[%c0_22, %c2, %c0_23], %58 {strides = array<i32>} : memref<1x4x128xf32, #tpu.memory_space<vmem>>, vector<1x1x128xf32>,
      %cst_24 = arith.constant dense<0.000000e+00> : vector<128xf32>
      %59 = vector.multi_reduction <add>, %46, %cst_24 [0] : vector<16x128xf32> to vector<128xf32>
      %c0_25 = arith.constant 0 : index
      %c3 = arith.constant 3 : index
      %c0_26 = arith.constant 0 : index
      %60 = vector.load %arg3[%c0_25, %c3, %c0_26] : memref<1x4x128xf32, #tpu.memory_space<vmem>>, vector<1x1x128xf32>
      %61 = vector.shape_cast %60 : vector<1x1x128xf32> to vector<128xf32>
      %62 = vector.shape_cast %59 : vector<128xf32> to vector<1x1x128xf32>
      tpu.vector_store %arg3[%c0_25, %c3, %c0_26], %62 {strides = array<i32>} : memref<1x4x128xf32, #tpu.memory_space<vmem>>, vector<1x1x128xf32>,
    } else {
    }
    return
  }
  func.func @transform_0(%arg0: i32) -> (i32, i32) {
    %c0_i32 = arith.constant 0 : i32
    %c0_i32_0 = arith.constant 0 : i32
    return %arg0, %c0_i32 : i32, i32
  }
  func.func @transform_1(%arg0: i32) -> (i32, i32) {
    %c0_i32 = arith.constant 0 : i32
    %c0_i32_0 = arith.constant 0 : i32
    return %arg0, %c0_i32 : i32, i32
  }
  func.func @transform_2(%arg0: i32) -> (i32, i32, i32) {
    %c0_i32 = arith.constant 0 : i32
    %c0_i32_0 = arith.constant 0 : i32
    %c0_i32_1 = arith.constant 0 : i32
    return %arg0, %c0_i32, %c0_i32_0 : i32, i32, i32
  }
}

</mosaic_0001>

<llo_original>
// kernel: tpu_custom_call.1
$region0: #{tpu_custom_call.1}
  #allocation0 [shape = 'u32[]', space=smem, size = 0x4, offset = 0x4, fixed_abs, tag = 'smem constant byte address 0x4 - core index']
  #allocation1 [shape = 'u32[72,128]{1,0:T(1,128)}', space=vmem, size = 0x9000, scoped, tag = 'internal scratch']
  %s0 = inlined_call_operand.hbm [shape: f32[16,128], index: 0, kind: input, shape index: {}]
  %s1 = inlined_call_operand.hbm [shape: f32[16,128], index: 1, kind: input, shape index: {}]
  %s2 = inlined_call_operand.hbm [shape: f32[1,4,128], index: 2, kind: output, shape index: {}]
  %s3 = sld [smem:[#allocation0]]
  $region34: #{tpu_custom_call.1} parent=0
    _
  %s5 = ssub.s32 1, %s3
  %s6 = scalar_select 0, %s5, %s3
  $region1: #{tpu_custom_call.1} parent=0
    #allocation2 [shape = 'u8[8192]{0}', space=vmem, size = 0x2000, scoped, tag = 'input window, operand 0, single buffered']
    #allocation3 [shape = 's32[1]{0}', space=sflag, size = 0x4, scoped, tag = 'scoped memory for tpu_custom_call.1']
    #allocation4 [shape = 's32[1]{0}', space=sflag, size = 0x4, scoped, tag = 'scoped memory for tpu_custom_call.1']
    #allocation5 [shape = 'u8[8192]{0}', space=vmem, size = 0x2000, scoped, tag = 'input window, operand 1, single buffered']
    #allocation6 [shape = 's32[1]{0}', space=sflag, size = 0x4, scoped, tag = 'scoped memory for tpu_custom_call.1']
    #allocation7 [shape = 'u8[2048]{0}', space=vmem, size = 0x800, scoped, tag = 'output window, operand 0, single buffered']
    %7 = vsyncpa [#allocation3], 0
    %8 = vsyncpa [#allocation6], 0
    %9 = vsyncpa [#allocation4], 0
    // Predicated region
    $region2: #{tpu_custom_call.1} parent=1 // pred_check
      _
    $region3: #{tpu_custom_call.1} parent=1 // pred_check_branch
      %11 = sbr.rel (0) target = $region5
    $region4: #{tpu_custom_call.1} parent=1 // pred_region
      %13 = vsyncadd [#allocation3], 0
      %s14 = sshll.u32 %s0, 4
      %s15 = int_to_ptr.hbm [resolvable:$true] %s14
      %s16 = sshll.u32 [#allocation2], 4
      %s17 = int_to_ptr.vmem [resolvable:$true] %s16
      %22 = dma.hbm_to_vmem [thread:$0]  %s15, 256, %s17, [#allocation3], 128, 128, 8
    $region5: #{tpu_custom_call.1} parent=1 // pred_fallthru
      _
    // Predicated region
    $region6: #{tpu_custom_call.1} parent=1 // pred_check
      _
    $region7: #{tpu_custom_call.1} parent=1 // pred_check_branch
      %24 = sbr.rel (0) target = $region9
    $region8: #{tpu_custom_call.1} parent=1 // pred_region
      %26 = vsyncadd [#allocation6], 0
      %s27 = sshll.u32 %s1, 4
      %s28 = int_to_ptr.hbm [resolvable:$true] %s27
      %s29 = sshll.u32 [#allocation5], 4
      %s30 = int_to_ptr.vmem [resolvable:$true] %s29
      %35 = dma.hbm_to_vmem [thread:$0]  %s28, 256, %s30, [#allocation6], 128, 128, 8
    $region9: #{tpu_custom_call.1} parent=1 // pred_fallthru
      _
    // Predicated region
    $region10: #{tpu_custom_call.1} parent=1 // pred_check
      _
    $region11: #{tpu_custom_call.1} parent=1 // pred_check_branch
      %37 = sbr.rel (0) target = $region13
    $region12: #{tpu_custom_call.1} parent=1 // pred_region
      %39 = dma.done [#allocation3], 256
    $region13: #{tpu_custom_call.1} parent=1 // pred_fallthru
      _
    // Predicated region
    $region14: #{tpu_custom_call.1} parent=1 // pred_check
      _
    $region15: #{tpu_custom_call.1} parent=1 // pred_check_branch
      %41 = sbr.rel (0) target = $region17
    $region16: #{tpu_custom_call.1} parent=1 // pred_region
      %43 = dma.done [#allocation6], 256
    $region17: #{tpu_custom_call.1} parent=1 // pred_fallthru
      _
    %s44 = sadd.s32 0, 1
    %s45 = smul.u32 %s44, 2048
    %p46 = scmp.le.s32.totalorder %s45, 2048
    // Predicated region
    $region18: #{tpu_custom_call.1} parent=1 // pred_check
      %p47 = pneg %p46
    $region19: #{tpu_custom_call.1} parent=1 // pred_check_branch
      %49 = sbr.rel (%p47) target = $region21
    $region20: #{tpu_custom_call.1} parent=1 // pred_region
      %v50 = vld [vmem:[#allocation2] sm:$0xff]
      %v51 = vld [vmem:[#allocation2 + $0x8] sm:$0xff]
      %v52 = vld [vmem:[#allocation5] sm:$0xff]
      %v53 = vld [vmem:[#allocation5 + $0x8] sm:$0xff]
      %v54 = vand.u32 2147483647, %v50
      %v55 = vand.u32 2147483647, %v51
      %v56 = vsub.f32 0.0, %v54
      %v57 = vsub.f32 0.0, %v55
      %v58 = vmul.f32 %v56, 1.442695
      %v59 = vpow.pop %v58
      %v60 = vmul.f32 %v57, 1.442695
      %v61 = vpow.pop %v60
      %v62 = vadd.f32 %v59, 1.0
      %v63 = vadd.f32 %v61, 1.0
      %v64 = vrcp.pop %v62
      %v65 = vrcp.pop %v63
      %vm66 = vcmp.ge.f32.partialorder %v50, 0.0
      %vm67 = vcmp.ge.f32.partialorder %v51, 0.0
      %v68 = vsub.f32 1.0, %v64
      %v69 = vsub.f32 1.0, %v65
      %v70 = vsel %vm66, %v64, %v68
      %v71 = vsel %vm67, %v65, %v69
      %v72 = vmax.f32 %v50, 0.0
      %v73 = vmax.f32 %v51, 0.0
      %v74 = vmul.f32 %v50, %v52
      %v75 = vmul.f32 %v51, %v53
      %v76 = vsub.f32 %v72, %v74
      %v77 = vsub.f32 %v73, %v75
      %v78 = vadd.f32 %v59, 1.0
      %v79 = vlog2.pop %v78
      %v80 = vmul.f32 %v79, 0.6931472
      %v81 = vmul.f32 -0.5, %v59
      %v82 = vadd.f32 %v81, 1.0
      %v83 = vmul.f32 %v82, %v59
      %v84 = vand.u32 2147483647, %v59
      %vm85 = vcmp.lt.f32.partialorder %v84, 0.0004427343
      %v86 = vsel %vm85, %v83, %v80
      %v87 = vadd.f32 %v61, 1.0
      %v88 = vlog2.pop %v87
      %v89 = vmul.f32 %v88, 0.6931472
      %v90 = vmul.f32 -0.5, %v61
      %v91 = vadd.f32 %v90, 1.0
      %v92 = vmul.f32 %v91, %v61
      %v93 = vand.u32 2147483647, %v61
      %vm94 = vcmp.lt.f32.partialorder %v93, 0.0004427343
      %v95 = vsel %vm94, %v92, %v89
      %v96 = vadd.f32 %v76, %v86
      %v97 = vadd.f32 %v77, %v95
      %v98 = vmul.f32 %v70, %v52
      %v99 = vmul.f32 %v71, %v53
      %v100 = vadd.f32 %v98, %v99
      %v101 = vrot.slane %v100, 4
      %v102 = vadd.f32 %v100, %v101
      %v103 = vrot.slane %v102, 2
      %v104 = vadd.f32 %v102, %v103
      %v105 = vrot.slane %v104, 1
      %v106 = vadd.f32 %v104, %v105
      %107 = vst [vmem:[#allocation7] sm:$0x1] %v106
      %v108 = vadd.f32 %v70, %v71
      %v109 = vrot.slane %v108, 4
      %v110 = vadd.f32 %v108, %v109
      %v111 = vrot.slane %v110, 2
      %v112 = vadd.f32 %v110, %v111
      %v113 = vrot.slane %v112, 1
      %v114 = vadd.f32 %v112, %v113
      %115 = vst [vmem:[#allocation7 + $0x1] sm:$0x1] %v114
      %v116 = vadd.f32 %v52, %v53
      %v117 = vrot.slane %v116, 4
      %v118 = vadd.f32 %v116, %v117
      %v119 = vrot.slane %v118, 2
      %v120 = vadd.f32 %v118, %v119
      %v121 = vrot.slane %v120, 1
      %v122 = vadd.f32 %v120, %v121
      %123 = vst [vmem:[#allocation7 + $0x2] sm:$0x1] %v122
      %v124 = vadd.f32 %v96, %v97
      %v125 = vrot.slane %v124, 4
      %v126 = vadd.f32 %v124, %v125
      %v127 = vrot.slane %v126, 2
      %v128 = vadd.f32 %v126, %v127
      %v129 = vrot.slane %v128, 1
      %v130 = vadd.f32 %v128, %v129
      %131 = vst [vmem:[#allocation7 + $0x3] sm:$0x1] %v130
    $region21: #{tpu_custom_call.1} parent=1 // pred_fallthru
      _
    %p132 = scmp.gt.s32.totalorder %s45, 2048
    // Predicated region
    $region22: #{tpu_custom_call.1} parent=1 // pred_check
      %p133 = pneg %p132
    $region23: #{tpu_custom_call.1} parent=1 // pred_check_branch
      %135 = sbr.rel (%p133) target = $region25
    $region24: #{tpu_custom_call.1} parent=1 // pred_region
      %v136 = vld [vmem:[#allocation2] sm:$0xff]
      %v137 = vld [vmem:[#allocation2 + $0x8] sm:$0xff]
      %v138 = vld [vmem:[#allocation5] sm:$0xff]
      %v139 = vld [vmem:[#allocation5 + $0x8] sm:$0xff]
      %v140 = vand.u32 2147483647, %v136
      %v141 = vand.u32 2147483647, %v137
      %v142 = vsub.f32 0.0, %v140
      %v143 = vsub.f32 0.0, %v141
      %v144 = vmul.f32 %v142, 1.442695
      %v145 = vpow.pop %v144
      %v146 = vmul.f32 %v143, 1.442695
      %v147 = vpow.pop %v146
      %v148 = vadd.f32 %v145, 1.0
      %v149 = vadd.f32 %v147, 1.0
      %v150 = vrcp.pop %v148
      %v151 = vrcp.pop %v149
      %vm152 = vcmp.ge.f32.partialorder %v136, 0.0
      %vm153 = vcmp.ge.f32.partialorder %v137, 0.0
      %v154 = vsub.f32 1.0, %v150
      %v155 = vsub.f32 1.0, %v151
      %v156 = vsel %vm152, %v150, %v154
      %v157 = vsel %vm153, %v151, %v155
      %v158 = vmax.f32 %v136, 0.0
      %v159 = vmax.f32 %v137, 0.0
      %v160 = vmul.f32 %v136, %v138
      %v161 = vmul.f32 %v137, %v139
      %v162 = vsub.f32 %v158, %v160
      %v163 = vsub.f32 %v159, %v161
      %v164 = vadd.f32 %v145, 1.0
      %v165 = vlog2.pop %v164
      %v166 = vmul.f32 %v165, 0.6931472
      %v167 = vmul.f32 -0.5, %v145
      %v168 = vadd.f32 %v167, 1.0
      %v169 = vmul.f32 %v168, %v145
      %v170 = vand.u32 2147483647, %v145
      %vm171 = vcmp.lt.f32.partialorder %v170, 0.0004427343
      %v172 = vsel %vm171, %v169, %v166
      %v173 = vadd.f32 %v147, 1.0
      %v174 = vlog2.pop %v173
      %v175 = vmul.f32 %v174, 0.6931472
      %v176 = vmul.f32 -0.5, %v147
      %v177 = vadd.f32 %v176, 1.0
      %v178 = vmul.f32 %v177, %v147
      %v179 = vand.u32 2147483647, %v147
      %vm180 = vcmp.lt.f32.partialorder %v179, 0.0004427343
      %v181 = vsel %vm180, %v178, %v175
      %v182 = vadd.f32 %v162, %v172
      %v183 = vadd.f32 %v163, %v181
      %v184 = vmul.f32 %v156, %v138
      %v185 = vmul.f32 %v157, %v139
      %v186 = vlaneseq
      %v187 = vshrl.u32 %v186, 7
      %v188 = vadd.s32 %v187, 8
      %v189 = vlaneseq
      %v190 = vand.u32 %v189, 127
      %s191 = smul.u32 0, 16
      %v192 = vstv %s191
      %v193 = vadd.s32 %v192, %v187
      %v194 = vadd.s32 %v192, %v188
      %v195 = vmul.u32 %v193, 128
      %v196 = vmul.u32 %v194, 128
      %v197 = vadd.s32 %v195, %v190
      %v198 = vadd.s32 %v196, %v190
      %vm199 = vcmp.lt.s32.totalorder %v197, 2048
      %vm200 = vcmp.lt.s32.totalorder %v198, 2048
      %v201 = vsel %vm199, %v184, 0.0
      %v202 = vsel %vm200, %v185, 0.0
      %v203 = vsel %vm199, %v156, 0.0
      %v204 = vsel %vm200, %v157, 0.0
      %v205 = vsel %vm199, %v138, 0.0
      %v206 = vsel %vm200, %v139, 0.0
      %v207 = vsel %vm199, %v182, 0.0
      %v208 = vsel %vm200, %v183, 0.0
      %v209 = vadd.f32 %v201, %v202
      %v210 = vrot.slane %v209, 4
      %v211 = vadd.f32 %v209, %v210
      %v212 = vrot.slane %v211, 2
      %v213 = vadd.f32 %v211, %v212
      %v214 = vrot.slane %v213, 1
      %v215 = vadd.f32 %v213, %v214
      %216 = vst [vmem:[#allocation7] sm:$0x1] %v215
      %v217 = vadd.f32 %v203, %v204
      %v218 = vrot.slane %v217, 4
      %v219 = vadd.f32 %v217, %v218
      %v220 = vrot.slane %v219, 2
      %v221 = vadd.f32 %v219, %v220
      %v222 = vrot.slane %v221, 1
      %v223 = vadd.f32 %v221, %v222
      %224 = vst [vmem:[#allocation7 + $0x1] sm:$0x1] %v223
      %v225 = vadd.f32 %v205, %v206
      %v226 = vrot.slane %v225, 4
      %v227 = vadd.f32 %v225, %v226
      %v228 = vrot.slane %v227, 2
      %v229 = vadd.f32 %v227, %v228
      %v230 = vrot.slane %v229, 1
      %v231 = vadd.f32 %v229, %v230
      %232 = vst [vmem:[#allocation7 + $0x2] sm:$0x1] %v231
      %v233 = vadd.f32 %v207, %v208
      %v234 = vrot.slane %v233, 4
      %v235 = vadd.f32 %v233, %v234
      %v236 = vrot.slane %v235, 2
      %v237 = vadd.f32 %v235, %v236
      %v238 = vrot.slane %v237, 1
      %v239 = vadd.f32 %v237, %v238
      %240 = vst [vmem:[#allocation7 + $0x3] sm:$0x1] %v239
    $region25: #{tpu_custom_call.1} parent=1 // pred_fallthru
      _
    // Predicated region
    $region26: #{tpu_custom_call.1} parent=1 // pred_check
      _
    $region27: #{tpu_custom_call.1} parent=1 // pred_check_branch
      %242 = sbr.rel (0) target = $region29
    $region28: #{tpu_custom_call.1} parent=1 // pred_region
      %244 = vsyncadd [#allocation4], 0
      %s246 = sshll.u32 [#allocation7], 4
      %s247 = int_to_ptr.vmem [resolvable:$true] %s246
      %s248 = sshll.u32 %s2, 4
      %s249 = int_to_ptr.hbm [resolvable:$true] %s248
      %251 = dma.vmem_to_hbm [thread:$0]  %s247, 64, %s249, [#allocation4]
    $region29: #{tpu_custom_call.1} parent=1 // pred_fallthru
      _
    // Predicated region
    $region30: #{tpu_custom_call.1} parent=1 // pred_check
      _
    $region31: #{tpu_custom_call.1} parent=1 // pred_check_branch
      %253 = sbr.rel (0) target = $region33
    $region32: #{tpu_custom_call.1} parent=1 // pred_region
      %255 = dma.done [#allocation4], 64
    $region33: #{tpu_custom_call.1} parent=1 // pred_fallthru
      _
    %256 = vsyncpa [#allocation3], 1
    %257 = vsyncpa [#allocation6], 1
    %258 = vsyncpa [#allocation4], 1

</llo_original>
